<compile_context>
chip_gen: v7x
topology: tpu7x:2x2x1
jax: 0.10.0
libtpu: 0.0.40
codegen_flags: <defaults>
</compile_context>

<pallas_src>
import math

import jax
import jax.numpy as jnp
from jax.experimental import pallas as pl
from jax.experimental.pallas import tpu as pltpu


def diabetes_mlp_kernel(xt_ref, w1_ref, b1_ref, w2_ref, b2_ref, w3_ref,
                        b3_ref, out_ref):
    xt = xt_ref[...]                                          # (D, TB)

    # layer1: (64, D) @ (D, TB) -> (64, TB), bias broadcast along lanes, ReLU
    h1 = jnp.dot(w1_ref[...], xt, preferred_element_type=jnp.float32)
    h1 = jnp.maximum(h1 + b1_ref[...], 0.0)                   # (64, TB)

    # layer2: (32, 64) @ (64, TB) -> (32, TB), bias, ReLU
    h2 = jnp.dot(w2_ref[...], h1, preferred_element_type=jnp.float32)
    h2 = jnp.maximum(h2 + b2_ref[...], 0.0)                   # (32, TB)

    # layer3: 32 -> 1 projection on VPU + sublane (XLU) reduction; keeps the
    # MXU free and produces a lane-dense (1, TB) row directly.
    z = jnp.sum(h2 * w3_ref[...], axis=0, keepdims=True)      # (1, TB)
    z = z + b3_ref[0, 0]

    # sigmoid via tanh (EUP slot, numerically stable for large |z|)
    out_ref[...] = 0.5 * (jnp.tanh(0.5 * z) + 1.0)


def diabetes_model_forward(x, params, *, tb=512):
    """x: (B, input_dim) f32.

    params (PyTorch-native orientation):
      w1: (64, D)  b1: (64, 1)
      w2: (32, 64) b2: (32, 1)
      w3: (32, 1)  b3: (1, 1)      (w3 stored as layer3.weight.T)
    Returns (B, 1) f32.
    """
    B, D = x.shape
    assert tb % 128 == 0, "batch tile must be a multiple of 128 (lane width)"

    # Don't pad further than one tile past B: clamp tile to the padded batch.
    padded_B = pl.cdiv(B, 128) * 128
    tb = min(tb, padded_B)
    padded_B = pl.cdiv(padded_B, tb) * tb
    grid = (padded_B // tb,)

    # Batch on the lane axis (lane-dense loads/stores); pad lanes with zeros.
    xt = jnp.zeros((D, padded_B), jnp.float32).at[:, :B].set(x.T)

    flops = 2 * padded_B * (D * 64 + 64 * 32 + 32)
    bytes_accessed = 4 * (D * padded_B            # x^T in
                          + 64 * D + 64           # layer1
                          + 32 * 64 + 32          # layer2
                          + 32 + 1                # layer3
                          + padded_B)             # out

    out = pl.pallas_call(
        diabetes_mlp_kernel,
        out_shape=jax.ShapeDtypeStruct((1, padded_B), jnp.float32),
        grid=grid,
        in_specs=[
            pl.BlockSpec((D, tb), lambda i: (0, i)),        # x^T, tiled on batch
            pl.BlockSpec((64, D), lambda i: (0, 0)),        # w1 (VMEM-resident)
            pl.BlockSpec((64, 1), lambda i: (0, 0)),        # b1
            pl.BlockSpec((32, 64), lambda i: (0, 0)),       # w2
            pl.BlockSpec((32, 1), lambda i: (0, 0)),        # b2
            pl.BlockSpec((32, 1), lambda i: (0, 0)),        # w3 (column form)
            pl.BlockSpec(memory_space=pltpu.SMEM),          # b3 scalar
        ],
        out_specs=pl.BlockSpec((1, tb), lambda i: (0, i)),  # lane-dense output
        compiler_params=pltpu.CompilerParams(
            dimension_semantics=("parallel",)),
        cost_estimate=pl.CostEstimate(
            flops=flops,
            transcendentals=padded_B,
            bytes_accessed=bytes_accessed),
    )(xt,
      params["w1"], params["b1"],
      params["w2"], params["b2"],
      params["w3"], params["b3"])

    return out[0, :B].reshape(B, 1)


def init_params(key, input_dim):
    """Deterministic synthetic init (PyTorch-style uniform fan-in bounds)."""
    ks = jax.random.split(key, 6)

    def linear(kw, kb, fan_in, fan_out):
        bound = 1.0 / math.sqrt(fan_in)
        w = jax.random.uniform(kw, (fan_out, fan_in), jnp.float32, -bound, bound)
        b = jax.random.uniform(kb, (fan_out, 1), jnp.float32, -bound, bound)
        return w, b

    w1, b1 = linear(ks[0], ks[1], input_dim, 64)
    w2, b2 = linear(ks[2], ks[3], 64, 32)
    w3, b3 = linear(ks[4], ks[5], 32, 1)
    return {"w1": w1, "b1": b1,
            "w2": w2, "b2": b2,
            "w3": w3.T,          # (32, 1): column form for lane-broadcast
            "b3": b3}            # (1, 1)


def reference_forward(x, p):
    h1 = jnp.maximum(x @ p["w1"].T + p["b1"][:, 0], 0.0)
    h2 = jnp.maximum(h1 @ p["w2"].T + p["b2"][:, 0], 0.0)
    return jax.nn.sigmoid(h2 @ p["w3"] + p["b3"][0, 0])


if __name__ == "__main__":
    key = jax.random.PRNGKey(0)
    k_x, k_p = jax.random.split(key)

    # input_dim comes from the checkpoint in the original script; synthetic here.
    batch, input_dim = 256, 16
    x = jax.random.normal(k_x, (batch, input_dim), dtype=jnp.float32)
    params = init_params(k_p, input_dim)

    # tb=128 keeps the demo small while still exercising a multi-step batch grid.
    out = diabetes_model_forward(x, params, tb=128)
    out = jax.block_until_ready(out)

    ref = reference_forward(x, params)
    assert out.shape == (batch, 1)
    assert jnp.allclose(out, ref, atol=1e-5, rtol=1e-5)

    print("KERNEL_OK")
</pallas_src>

<mosaic_0001>
module attributes {stable_mosaic.version = 11 : i64} {
  func.func @diabetes_mlp_kernel(%arg0: i32, %arg1: memref<16x128xf32, #tpu.memory_space<vmem>>, %arg2: memref<64x16xf32, #tpu.memory_space<vmem>>, %arg3: memref<64x1xf32, #tpu.memory_space<vmem>>, %arg4: memref<32x64xf32, #tpu.memory_space<vmem>>, %arg5: memref<32x1xf32, #tpu.memory_space<vmem>>, %arg6: memref<32x1xf32, #tpu.memory_space<vmem>>, %arg7: memref<1x1xf32, #tpu.memory_space<smem>>, %arg8: memref<1x128xf32, #tpu.memory_space<vmem>>) attributes {dimension_semantics = [#tpu.dimension_semantics<parallel>], iteration_bounds = array<i64: 2>, scalar_prefetch = 0 : i64, scratch_operands = 0 : i64, tpu.core_type = #tpu.core_type<tc>, window_params = [{transform_indices = @transform_0, window_bounds = array<i64: 16, 128>}, {pipeline_mode = #tpu.pipeline_mode<synchronous>, transform_indices = @transform_1, window_bounds = array<i64: 64, 16>}, {pipeline_mode = #tpu.pipeline_mode<synchronous>, transform_indices = @transform_2, window_bounds = array<i64: 64, 1>}, {pipeline_mode = #tpu.pipeline_mode<synchronous>, transform_indices = @transform_3, window_bounds = array<i64: 32, 64>}, {pipeline_mode = #tpu.pipeline_mode<synchronous>, transform_indices = @transform_4, window_bounds = array<i64: 32, 1>}, {pipeline_mode = #tpu.pipeline_mode<synchronous>, transform_indices = @transform_5, window_bounds = array<i64: 32, 1>}, {transform_indices = @transform_6, window_bounds = array<i64: 1, 1>}, {transform_indices = @transform_7, window_bounds = array<i64: 1, 128>}]} {
    %c0 = arith.constant 0 : index
    %c0_0 = arith.constant 0 : index
    %0 = vector.load %arg1[%c0, %c0_0] : memref<16x128xf32, #tpu.memory_space<vmem>>, vector<16x128xf32>
    %c0_1 = arith.constant 0 : index
    %c0_2 = arith.constant 0 : index
    %1 = vector.load %arg2[%c0_1, %c0_2] : memref<64x16xf32, #tpu.memory_space<vmem>>, vector<64x16xf32>
    %cst = arith.constant dense<0.000000e+00> : vector<64x128xf32>
    %2 = tpu.matmul %1, %0, %cst {dimension_numbers = #tpu.dot_dimension_numbers<[1], [0], [0], [1], [0, 0, 1, 1], [], []>} : vector<64x16xf32>, vector<16x128xf32>, vector<64x128xf32> -> vector<64x128xf32>
    %c0_3 = arith.constant 0 : index
    %c0_4 = arith.constant 0 : index
    %3 = vector.load %arg3[%c0_3, %c0_4] : memref<64x1xf32, #tpu.memory_space<vmem>>, vector<64x1xf32>
    %4 = vector.broadcast %3 : vector<64x1xf32> to vector<64x128xf32>
    %5 = arith.addf %2, %4 : vector<64x128xf32>
    %cst_5 = arith.constant 0.000000e+00 : f32
    %6 = vector.broadcast %cst_5 : f32 to vector<64x128xf32>
    %7 = arith.maximumf %5, %6 : vector<64x128xf32>
    %c0_6 = arith.constant 0 : index
    %c0_7 = arith.constant 0 : index
    %8 = vector.load %arg4[%c0_6, %c0_7] : memref<32x64xf32, #tpu.memory_space<vmem>>, vector<32x64xf32>
    %cst_8 = arith.constant dense<0.000000e+00> : vector<32x128xf32>
    %9 = tpu.matmul %8, %7, %cst_8 {dimension_numbers = #tpu.dot_dimension_numbers<[1], [0], [0], [1], [0, 0, 1, 1], [], []>} : vector<32x64xf32>, vector<64x128xf32>, vector<32x128xf32> -> vector<32x128xf32>
    %c0_9 = arith.constant 0 : index
    %c0_10 = arith.constant 0 : index
    %10 = vector.load %arg5[%c0_9, %c0_10] : memref<32x1xf32, #tpu.memory_space<vmem>>, vector<32x1xf32>
    %11 = vector.broadcast %10 : vector<32x1xf32> to vector<32x128xf32>
    %12 = arith.addf %9, %11 : vector<32x128xf32>
    %cst_11 = arith.constant 0.000000e+00 : f32
    %13 = vector.broadcast %cst_11 : f32 to vector<32x128xf32>
    %14 = arith.maximumf %12, %13 : vector<32x128xf32>
    %c0_12 = arith.constant 0 : index
    %c0_13 = arith.constant 0 : index
    %15 = vector.load %arg6[%c0_12, %c0_13] : memref<32x1xf32, #tpu.memory_space<vmem>>, vector<32x1xf32>
    %16 = vector.broadcast %15 : vector<32x1xf32> to vector<32x128xf32>
    %17 = arith.mulf %14, %16 : vector<32x128xf32>
    %cst_14 = arith.constant dense<0.000000e+00> : vector<128xf32>
    %18 = vector.multi_reduction <add>, %17, %cst_14 [0] : vector<32x128xf32> to vector<128xf32>
    %19 = vector.shape_cast %18 : vector<128xf32> to vector<1x128xf32>
    %c0_15 = arith.constant 0 : index
    %c0_16 = arith.constant 0 : index
    %20 = memref.load %arg7[%c0_15, %c0_16] : memref<1x1xf32, #tpu.memory_space<smem>>
    %21 = vector.broadcast %20 : f32 to vector<1x128xf32>
    %22 = arith.addf %19, %21 : vector<1x128xf32>
    %cst_17 = arith.constant 5.000000e-01 : f32
    %23 = vector.broadcast %cst_17 : f32 to vector<1x128xf32>
    %24 = arith.mulf %23, %22 : vector<1x128xf32>
    %25 = math.tanh %24 : vector<1x128xf32>
    %cst_18 = arith.constant 1.000000e+00 : f32
    %26 = vector.broadcast %cst_18 : f32 to vector<1x128xf32>
    %27 = arith.addf %25, %26 : vector<1x128xf32>
    %cst_19 = arith.constant 5.000000e-01 : f32
    %28 = vector.broadcast %cst_19 : f32 to vector<1x128xf32>
    %29 = arith.mulf %28, %27 : vector<1x128xf32>
    %c0_20 = arith.constant 0 : index
    %c0_21 = arith.constant 0 : index
    %30 = vector.load %arg8[%c0_20, %c0_21] : memref<1x128xf32, #tpu.memory_space<vmem>>, vector<1x128xf32>
    tpu.vector_store %arg8[%c0_20, %c0_21], %29 {strides = array<i32>} : memref<1x128xf32, #tpu.memory_space<vmem>>, vector<1x128xf32>,
    return
  }
  func.func @transform_0(%arg0: i32) -> (i32, i32) {
    %c0_i32 = arith.constant 0 : i32
    %c0_i32_0 = arith.constant 0 : i32
    return %c0_i32, %arg0 : i32, i32
  }
  func.func @transform_1(%arg0: i32) -> (i32, i32) {
    %c0_i32 = arith.constant 0 : i32
    %c0_i32_0 = arith.constant 0 : i32
    %c0_i32_1 = arith.constant 0 : i32
    return %c0_i32, %c0_i32_0 : i32, i32
  }
  func.func @transform_2(%arg0: i32) -> (i32, i32) {
    %c0_i32 = arith.constant 0 : i32
    %c0_i32_0 = arith.constant 0 : i32
    %c0_i32_1 = arith.constant 0 : i32
    return %c0_i32, %c0_i32_0 : i32, i32
  }
  func.func @transform_3(%arg0: i32) -> (i32, i32) {
    %c0_i32 = arith.constant 0 : i32
    %c0_i32_0 = arith.constant 0 : i32
    %c0_i32_1 = arith.constant 0 : i32
    return %c0_i32, %c0_i32_0 : i32, i32
  }
  func.func @transform_4(%arg0: i32) -> (i32, i32) {
    %c0_i32 = arith.constant 0 : i32
    %c0_i32_0 = arith.constant 0 : i32
    %c0_i32_1 = arith.constant 0 : i32
    return %c0_i32, %c0_i32_0 : i32, i32
  }
  func.func @transform_5(%arg0: i32) -> (i32, i32) {
    %c0_i32 = arith.constant 0 : i32
    %c0_i32_0 = arith.constant 0 : i32
    %c0_i32_1 = arith.constant 0 : i32
    return %c0_i32, %c0_i32_0 : i32, i32
  }
  func.func @transform_6(%arg0: i32) -> (i32, i32) {
    %c0_i32 = arith.constant 0 : i32
    %c0_i32_0 = arith.constant 0 : i32
    %c0_i32_1 = arith.constant 0 : i32
    return %c0_i32, %c0_i32_0 : i32, i32
  }
  func.func @transform_7(%arg0: i32) -> (i32, i32) {
    %c0_i32 = arith.constant 0 : i32
    %c0_i32_0 = arith.constant 0 : i32
    return %c0_i32, %arg0 : i32, i32
  }
}

</mosaic_0001>

<llo_original>
// kernel: tpu_custom_call.1
$region0: #{tpu_custom_call.1}
  #allocation0 [shape = 'u32[]', space=smem, size = 0x4, offset = 0x4, fixed_abs, tag = 'smem constant byte address 0x4 - core index']
  #allocation1 [shape = 'u32[144,128]{1,0:T(1,128)}', space=vmem, size = 0x12000, scoped, tag = 'internal scratch']
  #allocation2 [shape = 'f32[1,1]{1,0:T(1,128)S(6)}', space=smem, size = 0x200, scoped, tag = 'scoped memory for tpu_custom_call.1']
  %s0 = inlined_call_operand.vmem [shape: f32[16,256], index: 0, kind: input, shape index: {}]
  %s1 = inlined_call_operand.vmem [shape: f32[64,16], index: 1, kind: input, shape index: {}]
  %s2 = inlined_call_operand.vmem [shape: f32[64,1], index: 2, kind: input, shape index: {}]
  %s3 = inlined_call_operand.vmem [shape: f32[32,64], index: 3, kind: input, shape index: {}]
  %s4 = inlined_call_operand.vmem [shape: f32[32,1], index: 4, kind: input, shape index: {}]
  %s5 = inlined_call_operand.vmem [shape: f32[32,1], index: 5, kind: input, shape index: {}]
  %s6 = inlined_call_operand.<no memory space> [shape: f32[1,1], index: 6, kind: input, shape index: {}]
  %s7 = inlined_call_operand.hbm [shape: f32[1,256], index: 7, kind: output, shape index: {}]
  %s8 = sld [smem:[#allocation0]]
  $region99: #{tpu_custom_call.1} parent=0
    _
  %s10 = ssub.s32 1, %s8
  %s11 = scalar_select 0, %s10, %s8
  %12 = sst [smem:[#allocation2]] %s6
  $region1: #{tpu_custom_call.1} parent=0
    #allocation3 [shape = 'u8[16384]{0}', space=vmem, size = 0x4000, scoped, tag = 'input window, operand 0']
    #allocation4 [shape = 'u8[1024]{0}', space=vmem, size = 0x400, scoped, tag = 'output window, operand 0']
    #allocation5 [shape = 's32[2]{0}', space=sflag, size = 0x8, scoped, tag = 'scoped memory for tpu_custom_call.1']
    %13 = vsyncpa [#allocation5], 0
    %s14 = scalar_lea.sflag [#allocation5], 1
    %15 = vsyncpa %s14, 0
    loop: start=0, step=1, limit=4
    $region2: #{tpu_custom_call.1} parent=1 // loop_pre_header
      _
    $region3: #{tpu_custom_call.1} parent=1 // loop_header
      %s17 = sphi 0, %s21
      %p18 = scmp.ge.s32.totalorder %s17, 4
      %s27 = sphi 0, %s29
      %s30 = sphi 0, %s27
      %s31 = sphi 0, %s30
      %s47 = sphi 0, %s31
      %s51 = sphi 0, %s51
      %s53 = sphi 0, %s51
      %s54 = sphi 0, %s53
      %s68 = sphi 0, %s54
      %s72 = sphi 0, %s72
      %s74 = sphi 0, %s72
      %s75 = sphi 0, %s74
      %s89 = sphi 0, %s75
      %s93 = sphi 0, %s93
      %s95 = sphi 0, %s93
      %s96 = sphi 0, %s95
      %s110 = sphi 0, %s96
      %s114 = sphi 0, %s114
      %s116 = sphi 0, %s114
      %s117 = sphi 0, %s116
      %s131 = sphi 0, %s117
      %s135 = sphi 0, %s135
      %s137 = sphi 0, %s135
      %s138 = sphi 0, %s137
      %s152 = sphi 0, %s138
      %s156 = sphi 0, %s156
      %s158 = sphi 0, %s156
      %s159 = sphi 0, %s158
      %s173 = sphi 0, %s159
      %s179 = sphi 0, %s181
      %s182 = sphi 0, %s179
      %s183 = sphi 0, %s182
      %s199 = sphi 0, %s183
    $region4: #{tpu_custom_call.1} parent=1 // loop_header_branch
      %20 = sbr.rel (%p18) target = $region8
    $region5: #{tpu_custom_call.1} parent=1 // loop_body
      %s22 = ssub.s32 %s17, 1
      %s23 = ssub.s32 %s17, 2
      %s24 = sadd.s32 %s17, 1
      %s25 = ssub.s32 %s17, %s24
      %p26 = scmp.eq.s32.totalorder %s25, 0
      %s28 = sadd.s32 %s27, 1
      %s29 = scalar_select %p26, %s27, %s28
      %p32 = pneg %p26
      %p33 = scmp.eq.s32.totalorder %s17, 1
      %p34 = por %p32, %p33
      %p35 = scmp.ne.s32.totalorder %s27, %s30
      %p36 = scmp.eq.s32.totalorder %s17, 0
      %p37 = por %p35, %p36
      %p38 = scmp.ne.s32.totalorder %s27, %s30
      %p39 = scmp.eq.s32.totalorder %s22, 1
      %p40 = por %p38, %p39
      %p41 = scmp.ne.s32.totalorder %s30, %s31
      %p42 = scmp.eq.s32.totalorder %s22, 0
      %p43 = por %p41, %p42
      %p44 = scmp.ne.s32.totalorder %s30, %s31
      %p45 = scmp.eq.s32.totalorder %s23, 1
      %p46 = por %p44, %p45
      %p48 = scmp.ne.s32.totalorder %s31, %s47
      %p49 = scmp.eq.s32.totalorder %s23, 0
      %p50 = por %p48, %p49
      %s52 = sadd.s32 %s51, 1
      %p55 = scmp.eq.s32.totalorder %s17, 1
      %p56 = scmp.ne.s32.totalorder %s51, %s53
      %p57 = scmp.eq.s32.totalorder %s17, 0
      %p58 = por %p56, %p57
      %p59 = scmp.ne.s32.totalorder %s51, %s53
      %p60 = scmp.eq.s32.totalorder %s22, 1
      %p61 = por %p59, %p60
      %p62 = scmp.ne.s32.totalorder %s53, %s54
      %p63 = scmp.eq.s32.totalorder %s22, 0
      %p64 = por %p62, %p63
      %p65 = scmp.ne.s32.totalorder %s53, %s54
      %p66 = scmp.eq.s32.totalorder %s23, 1
      %p67 = por %p65, %p66
      %p69 = scmp.ne.s32.totalorder %s54, %s68
      %p70 = scmp.eq.s32.totalorder %s23, 0
      %p71 = por %p69, %p70
      %s73 = sadd.s32 %s72, 1
      %p76 = scmp.eq.s32.totalorder %s17, 1
      %p77 = scmp.ne.s32.totalorder %s72, %s74
      %p78 = scmp.eq.s32.totalorder %s17, 0
      %p79 = por %p77, %p78
      %p80 = scmp.ne.s32.totalorder %s72, %s74
      %p81 = scmp.eq.s32.totalorder %s22, 1
      %p82 = por %p80, %p81
      %p83 = scmp.ne.s32.totalorder %s74, %s75
      %p84 = scmp.eq.s32.totalorder %s22, 0
      %p85 = por %p83, %p84
      %p86 = scmp.ne.s32.totalorder %s74, %s75
      %p87 = scmp.eq.s32.totalorder %s23, 1
      %p88 = por %p86, %p87
      %p90 = scmp.ne.s32.totalorder %s75, %s89
      %p91 = scmp.eq.s32.totalorder %s23, 0
      %p92 = por %p90, %p91
      %s94 = sadd.s32 %s93, 1
      %p97 = scmp.eq.s32.totalorder %s17, 1
      %p98 = scmp.ne.s32.totalorder %s93, %s95
      %p99 = scmp.eq.s32.totalorder %s17, 0
      %p100 = por %p98, %p99
      %p101 = scmp.ne.s32.totalorder %s93, %s95
      %p102 = scmp.eq.s32.totalorder %s22, 1
      %p103 = por %p101, %p102
      %p104 = scmp.ne.s32.totalorder %s95, %s96
      %p105 = scmp.eq.s32.totalorder %s22, 0
      %p106 = por %p104, %p105
      %p107 = scmp.ne.s32.totalorder %s95, %s96
      %p108 = scmp.eq.s32.totalorder %s23, 1
      %p109 = por %p107, %p108
      %p111 = scmp.ne.s32.totalorder %s96, %s110
      %p112 = scmp.eq.s32.totalorder %s23, 0
      %p113 = por %p111, %p112
      %s115 = sadd.s32 %s114, 1
      %p118 = scmp.eq.s32.totalorder %s17, 1
      %p119 = scmp.ne.s32.totalorder %s114, %s116
      %p120 = scmp.eq.s32.totalorder %s17, 0
      %p121 = por %p119, %p120
      %p122 = scmp.ne.s32.totalorder %s114, %s116
      %p123 = scmp.eq.s32.totalorder %s22, 1
      %p124 = por %p122, %p123
      %p125 = scmp.ne.s32.totalorder %s116, %s117
      %p126 = scmp.eq.s32.totalorder %s22, 0
      %p127 = por %p125, %p126
      %p128 = scmp.ne.s32.totalorder %s116, %s117
      %p129 = scmp.eq.s32.totalorder %s23, 1
      %p130 = por %p128, %p129
      %p132 = scmp.ne.s32.totalorder %s117, %s131
      %p133 = scmp.eq.s32.totalorder %s23, 0
      %p134 = por %p132, %p133
      %s136 = sadd.s32 %s135, 1
      %p139 = scmp.eq.s32.totalorder %s17, 1
      %p140 = scmp.ne.s32.totalorder %s135, %s137
      %p141 = scmp.eq.s32.totalorder %s17, 0
      %p142 = por %p140, %p141
      %p143 = scmp.ne.s32.totalorder %s135, %s137
      %p144 = scmp.eq.s32.totalorder %s22, 1
      %p145 = por %p143, %p144
      %p146 = scmp.ne.s32.totalorder %s137, %s138
      %p147 = scmp.eq.s32.totalorder %s22, 0
      %p148 = por %p146, %p147
      %p149 = scmp.ne.s32.totalorder %s137, %s138
      %p150 = scmp.eq.s32.totalorder %s23, 1
      %p151 = por %p149, %p150
      %p153 = scmp.ne.s32.totalorder %s138, %s152
      %p154 = scmp.eq.s32.totalorder %s23, 0
      %p155 = por %p153, %p154
      %s157 = sadd.s32 %s156, 1
      %p160 = scmp.eq.s32.totalorder %s17, 1
      %p161 = scmp.ne.s32.totalorder %s156, %s158
      %p162 = scmp.eq.s32.totalorder %s17, 0
      %p163 = por %p161, %p162
      %p164 = scmp.ne.s32.totalorder %s156, %s158
      %p165 = scmp.eq.s32.totalorder %s22, 1
      %p166 = por %p164, %p165
      %p167 = scmp.ne.s32.totalorder %s158, %s159
      %p168 = scmp.eq.s32.totalorder %s22, 0
      %p169 = por %p167, %p168
      %p170 = scmp.ne.s32.totalorder %s158, %s159
      %p171 = scmp.eq.s32.totalorder %s23, 1
      %p172 = por %p170, %p171
      %p174 = scmp.ne.s32.totalorder %s159, %s173
      %p175 = scmp.eq.s32.totalorder %s23, 0
      %p176 = por %p174, %p175
      %s177 = ssub.s32 %s17, %s24
      %p178 = scmp.eq.s32.totalorder %s177, 0
      %s180 = sadd.s32 %s179, 1
      %s181 = scalar_select %p178, %s179, %s180
      %p184 = pneg %p178
      %p185 = scmp.eq.s32.totalorder %s17, 1
      %p186 = por %p184, %p185
      %p187 = scmp.ne.s32.totalorder %s179, %s182
      %p188 = scmp.eq.s32.totalorder %s17, 0
      %p189 = por %p187, %p188
      %p190 = scmp.ne.s32.totalorder %s179, %s182
      %p191 = scmp.eq.s32.totalorder %s22, 1
      %p192 = por %p190, %p191
      %p193 = scmp.ne.s32.totalorder %s182, %s183
      %p194 = scmp.eq.s32.totalorder %s22, 0
      %p195 = por %p193, %p194
      %p196 = scmp.ne.s32.totalorder %s182, %s183
      %p197 = scmp.eq.s32.totalorder %s23, 1
      %p198 = por %p196, %p197
      %p200 = scmp.ne.s32.totalorder %s183, %s199
      %p201 = scmp.eq.s32.totalorder %s23, 0
      %p202 = por %p200, %p201
      %p203 = scmp.le.s32.totalorder 1, %s17
      %p204 = scmp.lt.s32.totalorder %s17, 3
      %p205 = pnand %p203, %p204
      %p206 = pneg %p205
      // Predicated region
      $region9: #{tpu_custom_call.1} parent=5 // pred_check
        _
      $region10: #{tpu_custom_call.1} parent=5 // pred_check_branch
        %208 = sbr.rel (%p205) target = $region12
      $region11: #{tpu_custom_call.1} parent=5 // pred_region
        %s209 = ssub.s32 %s17, 1
        // Predicated region
        $region13: #{tpu_custom_call.1} parent=11 // pred_check
          %p210 = pneg %p64
        $region14: #{tpu_custom_call.1} parent=11 // pred_check_branch
          %212 = sbr.rel (%p210) target = $region16
        $region15: #{tpu_custom_call.1} parent=11 // pred_region
          _
        $region16: #{tpu_custom_call.1} parent=11 // pred_fallthru
          _
        // Predicated region
        $region17: #{tpu_custom_call.1} parent=11 // pred_check
          %p213 = pneg %p85
        $region18: #{tpu_custom_call.1} parent=11 // pred_check_branch
          %215 = sbr.rel (%p213) target = $region20
        $region19: #{tpu_custom_call.1} parent=11 // pred_region
          _
        $region20: #{tpu_custom_call.1} parent=11 // pred_fallthru
          _
        // Predicated region
        $region21: #{tpu_custom_call.1} parent=11 // pred_check
          %p216 = pneg %p106
        $region22: #{tpu_custom_call.1} parent=11 // pred_check_branch
          %218 = sbr.rel (%p216) target = $region24
        $region23: #{tpu_custom_call.1} parent=11 // pred_region
          _
        $region24: #{tpu_custom_call.1} parent=11 // pred_fallthru
          _
        // Predicated region
        $region25: #{tpu_custom_call.1} parent=11 // pred_check
          %p219 = pneg %p127
        $region26: #{tpu_custom_call.1} parent=11 // pred_check_branch
          %221 = sbr.rel (%p219) target = $region28
        $region27: #{tpu_custom_call.1} parent=11 // pred_region
          _
        $region28: #{tpu_custom_call.1} parent=11 // pred_fallthru
          _
        // Predicated region
        $region29: #{tpu_custom_call.1} parent=11 // pred_check
          %p222 = pneg %p148
        $region30: #{tpu_custom_call.1} parent=11 // pred_check_branch
          %224 = sbr.rel (%p222) target = $region32
        $region31: #{tpu_custom_call.1} parent=11 // pred_region
          _
        $region32: #{tpu_custom_call.1} parent=11 // pred_fallthru
          _
        // Predicated region
        $region33: #{tpu_custom_call.1} parent=11 // pred_check
          %p225 = pneg %p169
        $region34: #{tpu_custom_call.1} parent=11 // pred_check_branch
          %227 = sbr.rel (%p225) target = $region36
        $region35: #{tpu_custom_call.1} parent=11 // pred_region
          _
        $region36: #{tpu_custom_call.1} parent=11 // pred_fallthru
          _
      $region12: #{tpu_custom_call.1} parent=5 // pred_fallthru
        _
      %p228 = scmp.lt.s32.totalorder %s17, 2
      // Predicated region
      $region37: #{tpu_custom_call.1} parent=5 // pred_check
        %p229 = pneg %p228
      $region38: #{tpu_custom_call.1} parent=5 // pred_check_branch
        %231 = sbr.rel (%p229) target = $region40
      $region39: #{tpu_custom_call.1} parent=5 // pred_region
        // Predicated region
        $region41: #{tpu_custom_call.1} parent=39 // pred_check
          %p232 = pneg %p37
        $region42: #{tpu_custom_call.1} parent=39 // pred_check_branch
          %234 = sbr.rel (%p232) target = $region44
        $region43: #{tpu_custom_call.1} parent=39 // pred_region
          %s235 = sand.u32 %s27, 1
          %s236 = sand.u32 %s27, 1
          %s237 = smul.addr %s236, 16
          %s238 = scalar_lea.vmem [#allocation3], %s237
          %s239 = smul.addr %s17, 8
          %s240 = scalar_lea.vmem %s0, %s239
          // Predicated region
          $region45: #{tpu_custom_call.1} parent=43 // pred_check
            _
          $region46: #{tpu_custom_call.1} parent=43 // pred_check_branch
            %242 = sbr.rel (0) target = $region48
          $region47: #{tpu_custom_call.1} parent=43 // pred_region
            // Predicated region
            $region49: #{tpu_custom_call.1} parent=47 // pred_check
              _
            $region50: #{tpu_custom_call.1} parent=47 // pred_check_branch
              %244 = sbr.rel (0) target = $region52
            $region51: #{tpu_custom_call.1} parent=47 // pred_region
              // Predicated region
              $region64: #{tpu_custom_call.1} parent=51 // pred_check
                _
              $region65: #{tpu_custom_call.1} parent=51 // pred_check_branch
                %261 = sbr.rel (0) target = $region67
              $region66: #{tpu_custom_call.1} parent=51 // pred_region
                loop: start=0, step=1, limit=1
                $region68: #{tpu_custom_call.1} parent=66 // loop_pre_header
                  _
                $region69: #{tpu_custom_call.1} parent=66 // loop_header
                  %s263 = sphi 0, %s267
                  %p264 = scmp.ge.s32.totalorder %s263, 1
                  %s268 = sphi %s240, %s240
                  %s269 = sphi %s238, %s238
                $region70: #{tpu_custom_call.1} parent=66 // loop_header_branch
                  %266 = sbr.rel (%p264) target = $region74
                $region71: #{tpu_custom_call.1} parent=66 // loop_body
                  %v270 = vld [vmem:[%s268] sm:$0xff]
                  %271 = vst [vmem:[%s269] sm:$0xff] %v270
                  %v272 = vld [vmem:[%s268 + $0x10] sm:$0xff]
                  %273 = vst [vmem:[%s269 + $0x8] sm:$0xff] %v272
                $region72: #{tpu_custom_call.1} parent=66 // loop_footer
                  %s267 = sadd.s32 1, %s263
                $region73: #{tpu_custom_call.1} parent=66 // loop_footer_branch
                  %262 = sbr.rel target = $region69
                $region74: #{tpu_custom_call.1} parent=66 // loop_exit
                  _
              $region67: #{tpu_custom_call.1} parent=51 // pred_fallthru
                _
              // Predicated region
              $region75: #{tpu_custom_call.1} parent=51 // pred_check
                _
              $region76: #{tpu_custom_call.1} parent=51 // pred_check_branch
                %275 = sbr.rel target = $region78
              $region77: #{tpu_custom_call.1} parent=51 // pred_region
                _
              $region78: #{tpu_custom_call.1} parent=51 // pred_fallthru
                _
            $region52: #{tpu_custom_call.1} parent=47 // pred_fallthru
              _
            // Predicated region
            $region53: #{tpu_custom_call.1} parent=47 // pred_check
              _
            $region54: #{tpu_custom_call.1} parent=47 // pred_check_branch
              %246 = sbr.rel target = $region56
            $region55: #{tpu_custom_call.1} parent=47 // pred_region
              loop: start=0, step=1, limit=1
              $region57: #{tpu_custom_call.1} parent=55 // loop_pre_header
                _
              $region58: #{tpu_custom_call.1} parent=55 // loop_header
                %s249 = sphi 0, %s253
                %p250 = scmp.ge.s32.totalorder %s249, 1
                %s254 = sphi %s240, %s240
                %s255 = sphi %s238, %s238
              $region59: #{tpu_custom_call.1} parent=55 // loop_header_branch
                %252 = sbr.rel (%p250) target = $region63
              $region60: #{tpu_custom_call.1} parent=55 // loop_body
                %v256 = vld [vmem:[%s254] sm:$0xff]
                %257 = vst [vmem:[%s255] sm:$0xff] %v256
                %v258 = vld [vmem:[%s254 + $0x10] sm:$0xff]
                %259 = vst [vmem:[%s255 + $0x8] sm:$0xff] %v258
              $region61: #{tpu_custom_call.1} parent=55 // loop_footer
                %s253 = sadd.s32 1, %s249
              $region62: #{tpu_custom_call.1} parent=55 // loop_footer_branch
                %248 = sbr.rel target = $region58
              $region63: #{tpu_custom_call.1} parent=55 // loop_exit
                _
            $region56: #{tpu_custom_call.1} parent=47 // pred_fallthru
              _
          $region48: #{tpu_custom_call.1} parent=43 // pred_fallthru
            _
          %276 = vnop
        $region44: #{tpu_custom_call.1} parent=39 // pred_fallthru
          _
      $region40: #{tpu_custom_call.1} parent=5 // pred_fallthru
        _
      %p277 = scmp.le.s32.totalorder 1, %s17
      %p278 = scmp.lt.s32.totalorder %s17, 3
      %p279 = pnand %p277, %p278
      %p280 = pneg %p279
      // Predicated region
      $region79: #{tpu_custom_call.1} parent=5 // pred_check
        _
      $region80: #{tpu_custom_call.1} parent=5 // pred_check_branch
        %282 = sbr.rel (%p279) target = $region82
      $region81: #{tpu_custom_call.1} parent=5 // pred_region
        %s283 = ssub.s32 %s17, 1
        %s284 = sand.u32 %s30, 1
        %s285 = sand.u32 %s30, 1
        %s286 = smul.addr %s285, 16
        %s287 = scalar_lea.vmem [#allocation3], %s286
        // Predicated region
        $region83: #{tpu_custom_call.1} parent=81 // pred_check
          %p288 = pneg %p43
        $region84: #{tpu_custom_call.1} parent=81 // pred_check_branch
          %290 = sbr.rel (%p288) target = $region86
        $region85: #{tpu_custom_call.1} parent=81 // pred_region
          _
        $region86: #{tpu_custom_call.1} parent=81 // pred_fallthru
          _
        %s291 = sand.u32 %s30, 1
        %s292 = sand.u32 %s30, 1
        %s293 = smul.addr %s292, 16
        %s294 = scalar_lea.vmem [#allocation3], %s293
        %p295 = pneg %p43
        %p296 = pneg %p40
        %p297 = pneg %p64
        %p298 = pneg %p61
        %p299 = pneg %p85
        %p300 = pneg %p82
        %p301 = pneg %p106
        %p302 = pneg %p103
        %p303 = pneg %p127
        %p304 = pneg %p124
        %p305 = pneg %p148
        %p306 = pneg %p145
        %p307 = pneg %p169
        %p308 = pneg %p166
        %p309 = pneg %p195
        %p310 = pneg %p192
        %s311 = sand.u32 %s182, 1
        %s312 = scalar_lea.sflag [#allocation5], %s311
        %s313 = sand.u32 %s182, 1
        %s314 = scalar_lea.vmem [#allocation4], %s313
        %v315 = vld [vmem:[%s287] sm:$0xff]
        %v316 = vld [vmem:[%s287 + $0x8] sm:$0xff]
        %v317 = vld [vmem:[%s1] sm:$0xff]
        %v318 = vld [vmem:[%s1 + $0x8] sm:$0xff]
        %v319 = vld [vmem:[%s1 + $0x10] sm:$0xff]
        %v320 = vld [vmem:[%s1 + $0x18] sm:$0xff]
        %v321 = vld [vmem:[%s1 + $0x20] sm:$0xff]
        %v322 = vld [vmem:[%s1 + $0x28] sm:$0xff]
        %v323 = vld [vmem:[%s1 + $0x30] sm:$0xff]
        %v324 = vld [vmem:[%s1 + $0x38] sm:$0xff]
        %v325 = vld [vmem:[%s2] sm:$0xff]
        %v326 = vld [vmem:[%s2 + $0x8] sm:$0xff]
        %v327 = vld [vmem:[%s2 + $0x10] sm:$0xff]
        %v328 = vld [vmem:[%s2 + $0x18] sm:$0xff]
        %v329 = vld [vmem:[%s2 + $0x20] sm:$0xff]
        %v330 = vld [vmem:[%s2 + $0x28] sm:$0xff]
        %v331 = vld [vmem:[%s2 + $0x30] sm:$0xff]
        %v332 = vld [vmem:[%s2 + $0x38] sm:$0xff]
        %334 = vset.pattern.permute.xlu0 0
        %335 = vperm.xlu0 %334, %v325
        %v336 = vpop.permute.xlu0 %335
        %339 = vset.pattern.permute.xlu0 0
        %340 = vperm.xlu0 %339, %v326
        %v341 = vpop.permute.xlu0 %340
        %344 = vset.pattern.permute.xlu0 0
        %345 = vperm.xlu0 %344, %v327
        %v346 = vpop.permute.xlu0 %345
        %349 = vset.pattern.permute.xlu0 0
        %350 = vperm.xlu0 %349, %v328
        %v351 = vpop.permute.xlu0 %350
        %354 = vset.pattern.permute.xlu0 0
        %355 = vperm.xlu0 %354, %v329
        %v356 = vpop.permute.xlu0 %355
        %359 = vset.pattern.permute.xlu0 0
        %360 = vperm.xlu0 %359, %v330
        %v361 = vpop.permute.xlu0 %360
        %364 = vset.pattern.permute.xlu0 0
        %365 = vperm.xlu0 %364, %v331
        %v366 = vpop.permute.xlu0 %365
        %369 = vset.pattern.permute.xlu0 0
        %370 = vperm.xlu0 %369, %v332
        %v371 = vpop.permute.xlu0 %370
        %vm373 = vcmask 130048
        %v375 = vsel %vm373, %v317, 0
        %v378 = vsel %vm373, %v318, 0
        %v381 = vsel %vm373, %v319, 0
        %v384 = vsel %vm373, %v320, 0
        %v387 = vsel %vm373, %v321, 0
        %v390 = vsel %vm373, %v322, 0
        %v393 = vsel %vm373, %v323, 0
        %v396 = vsel %vm373, %v324, 0
        %398 = vmatprep.subr.mxu0 0.0
        %399 = vmatpush1.msra.mxu0 %v315
        %400 = vmatprep.subr.mxu0 0.0
        %401 = vmatpush1.msra.mxu0 %v316
        %402 = vmatprep.subr.mxu0 0.0
        %403 = vmatpush1.msra.mxu0 0.0
        %404 = vmatprep.subr.mxu0 0.0
        %405 = vmatpush1.msra.mxu0 0.0
        %406 = vmatprep.subr.mxu0 0.0
        %407 = vmatpush1.msra.mxu0 0.0
        %408 = vmatprep.subr.mxu0 0.0
        %409 = vmatpush1.msra.mxu0 0.0
        %410 = vmatprep.subr.mxu0 0.0
        %411 = vmatpush1.msra.mxu0 0.0
        %412 = vmatprep.subr.mxu0 0.0
        %413 = vmatpush1.msra.mxu0 0.0
        %414 = vmatprep.subr.mxu0 0.0
        %415 = vmatpush1.msra.mxu0 0.0
        %416 = vmatprep.subr.mxu0 0.0
        %417 = vmatpush1.msra.mxu0 0.0
        %418 = vmatprep.subr.mxu0 0.0
        %419 = vmatpush1.msra.mxu0 0.0
        %420 = vmatprep.subr.mxu0 0.0
        %421 = vmatpush1.msra.mxu0 0.0
        %422 = vmatprep.subr.mxu0 0.0
        %423 = vmatpush1.msra.mxu0 0.0
        %424 = vmatprep.subr.mxu0 0.0
        %425 = vmatpush1.msra.mxu0 0.0
        %426 = vmatprep.subr.mxu0 0.0
        %427 = vmatpush1.msra.mxu0 0.0
        %428 = vmatprep.subr.mxu0 0.0
        %429 = vmatpush1.msra.mxu0 0.0
        %430 = vmatprep.subr.mxu0 0.0
        %431 = vmatpush1.msra.mxu0 0.0
        %432 = vmatprep.subr.mxu0 0.0
        %433 = vmatpush1.msra.mxu0 0.0
        %434 = vmatprep.subr.mxu0 0.0
        %435 = vmatpush1.msra.mxu0 0.0
        %436 = vmatprep.subr.mxu0 0.0
        %437 = vmatpush1.msra.mxu0 0.0
        %438 = vmatprep.subr.mxu0 0.0
        %439 = vmatpush1.msra.mxu0 0.0
        %440 = vmatprep.subr.mxu0 0.0
        %441 = vmatpush1.msra.mxu0 0.0
        %442 = vmatprep.subr.mxu0 0.0
        %443 = vmatpush1.msra.mxu0 0.0
        %444 = vmatprep.subr.mxu0 0.0
        %445 = vmatpush1.msra.mxu0 0.0
        %446 = vmatprep.subr.mxu0 0.0
        %447 = vmatpush1.msra.mxu0 0.0
        %448 = vmatprep.subr.mxu0 0.0
        %449 = vmatpush1.msra.mxu0 0.0
        %450 = vmatprep.subr.mxu0 0.0
        %451 = vmatpush1.msra.mxu0 0.0
        %452 = vmatprep.subr.mxu0 0.0
        %453 = vmatpush1.msra.mxu0 0.0
        %454 = vmatprep.subr.mxu0 0.0
        %455 = vmatpush1.msra.mxu0 0.0
        %456 = vmatprep.subr.mxu0 0.0
        %457 = vmatpush1.msra.mxu0 0.0
        %458 = vmatprep.subr.mxu0 0.0
        %459 = vmatpush1.msra.mxu0 0.0
        %460 = vmatprep.subr.mxu0 0.0
        %461 = vmatpush1.msra.mxu0 0.0
        %462 = vmatprep.mubr.f32.mxu0 0.0
        %463 = vmatmul.mubr.f32.gmra.mrb[0].mxu0 %v375
        %v464 = vpop.f32.mrb[0].mxu0
        %v465 = vadd.f32 %v336, %v464
        %v466 = vpop.f32.mrb[0].mxu0
        %467 = vmatprep.mubr.f32.mxu0 0.0
        %468 = vmatmul.mubr.f32.gmra.mrb[0].mxu0 %v378
        %v469 = vpop.f32.mrb[0].mxu0
        %v470 = vadd.f32 %v341, %v469
        %v471 = vpop.f32.mrb[0].mxu0
        %472 = vmatprep.mubr.f32.mxu0 0.0
        %473 = vmatmul.mubr.f32.gmra.mrb[0].mxu0 %v381
        %v474 = vpop.f32.mrb[0].mxu0
        %v475 = vadd.f32 %v346, %v474
        %v476 = vpop.f32.mrb[0].mxu0
        %477 = vmatprep.mubr.f32.mxu0 0.0
        %478 = vmatmul.mubr.f32.gmra.mrb[0].mxu0 %v384
        %v479 = vpop.f32.mrb[0].mxu0
        %v480 = vadd.f32 %v351, %v479
        %v481 = vpop.f32.mrb[0].mxu0
        %482 = vmatprep.mubr.f32.mxu0 0.0
        %483 = vmatmul.mubr.f32.gmra.mrb[0].mxu0 %v387
        %v484 = vpop.f32.mrb[0].mxu0
        %v485 = vadd.f32 %v356, %v484
        %v486 = vpop.f32.mrb[0].mxu0
        %487 = vmatprep.mubr.f32.mxu0 0.0
        %488 = vmatmul.mubr.f32.gmra.mrb[0].mxu0 %v390
        %v489 = vpop.f32.mrb[0].mxu0
        %v490 = vadd.f32 %v361, %v489
        %v491 = vpop.f32.mrb[0].mxu0
        %492 = vmatprep.mubr.f32.mxu0 0.0
        %493 = vmatmul.mubr.f32.gmra.mrb[0].mxu0 %v393
        %v494 = vpop.f32.mrb[0].mxu0
        %v495 = vadd.f32 %v366, %v494
        %v496 = vpop.f32.mrb[0].mxu0
        %497 = vmatprep.mubr.f32.mxu0 0.0
        %498 = vmatmul.mubr.f32.gmra.mrb[0].mxu0 %v396
        %v499 = vpop.f32.mrb[0].mxu0
        %v500 = vadd.f32 %v371, %v499
        %v501 = vpop.f32.mrb[0].mxu0
        %502 = vdwg.mxu0
        %v503 = vmax.f32 %v465, 0.0
        %v504 = vmax.f32 %v470, 0.0
        %v505 = vmax.f32 %v475, 0.0
        %v506 = vmax.f32 %v480, 0.0
        %v507 = vmax.f32 %v485, 0.0
        %v508 = vmax.f32 %v490, 0.0
        %v509 = vmax.f32 %v495, 0.0
        %v510 = vmax.f32 %v500, 0.0
        %v511 = vld [vmem:[%s3] sm:$0xff]
        %v512 = vld [vmem:[%s3 + $0x8] sm:$0xff]
        %v513 = vld [vmem:[%s3 + $0x10] sm:$0xff]
        %v514 = vld [vmem:[%s3 + $0x18] sm:$0xff]
        %v515 = vld [vmem:[%s4] sm:$0xff]
        %v516 = vld [vmem:[%s4 + $0x8] sm:$0xff]
        %v517 = vld [vmem:[%s4 + $0x10] sm:$0xff]
        %v518 = vld [vmem:[%s4 + $0x18] sm:$0xff]
        %520 = vset.pattern.permute.xlu0 0
        %521 = vperm.xlu0 %520, %v515
        %v522 = vpop.permute.xlu0 %521
        %525 = vset.pattern.permute.xlu0 0
        %526 = vperm.xlu0 %525, %v516
        %v527 = vpop.permute.xlu0 %526
        %530 = vset.pattern.permute.xlu0 0
        %531 = vperm.xlu0 %530, %v517
        %v532 = vpop.permute.xlu0 %531
        %535 = vset.pattern.permute.xlu0 0
        %536 = vperm.xlu0 %535, %v518
        %v537 = vpop.permute.xlu0 %536
        %vm539 = vcmask 523264
        %v541 = vsel %vm539, %v511, 0
        %v544 = vsel %vm539, %v512, 0
        %v547 = vsel %vm539, %v513, 0
        %v550 = vsel %vm539, %v514, 0
        %552 = vmatprep.subr.mxu0 0.0
        %553 = vmatpush1.msra.mxu0 %v503
        %554 = vmatprep.subr.mxu0 0.0
        %555 = vmatpush1.msra.mxu0 %v504
        %556 = vmatprep.subr.mxu0 0.0
        %557 = vmatpush1.msra.mxu0 %v505
        %558 = vmatprep.subr.mxu0 0.0
        %559 = vmatpush1.msra.mxu0 %v506
        %560 = vmatprep.subr.mxu0 0.0
        %561 = vmatpush1.msra.mxu0 %v507
        %562 = vmatprep.subr.mxu0 0.0
        %563 = vmatpush1.msra.mxu0 %v508
        %564 = vmatprep.subr.mxu0 0.0
        %565 = vmatpush1.msra.mxu0 %v509
        %566 = vmatprep.subr.mxu0 0.0
        %567 = vmatpush1.msra.mxu0 %v510
        %568 = vmatprep.subr.mxu0 0.0
        %569 = vmatpush1.msra.mxu0 0.0
        %570 = vmatprep.subr.mxu0 0.0
        %571 = vmatpush1.msra.mxu0 0.0
        %572 = vmatprep.subr.mxu0 0.0
        %573 = vmatpush1.msra.mxu0 0.0
        %574 = vmatprep.subr.mxu0 0.0
        %575 = vmatpush1.msra.mxu0 0.0
        %576 = vmatprep.subr.mxu0 0.0
        %577 = vmatpush1.msra.mxu0 0.0
        %578 = vmatprep.subr.mxu0 0.0
        %579 = vmatpush1.msra.mxu0 0.0
        %580 = vmatprep.subr.mxu0 0.0
        %581 = vmatpush1.msra.mxu0 0.0
        %582 = vmatprep.subr.mxu0 0.0
        %583 = vmatpush1.msra.mxu0 0.0
        %584 = vmatprep.subr.mxu0 0.0
        %585 = vmatpush1.msra.mxu0 0.0
        %586 = vmatprep.subr.mxu0 0.0
        %587 = vmatpush1.msra.mxu0 0.0
        %588 = vmatprep.subr.mxu0 0.0
        %589 = vmatpush1.msra.mxu0 0.0
        %590 = vmatprep.subr.mxu0 0.0
        %591 = vmatpush1.msra.mxu0 0.0
        %592 = vmatprep.subr.mxu0 0.0
        %593 = vmatpush1.msra.mxu0 0.0
        %594 = vmatprep.subr.mxu0 0.0
        %595 = vmatpush1.msra.mxu0 0.0
        %596 = vmatprep.subr.mxu0 0.0
        %597 = vmatpush1.msra.mxu0 0.0
        %598 = vmatprep.subr.mxu0 0.0
        %599 = vmatpush1.msra.mxu0 0.0
        %600 = vmatprep.subr.mxu0 0.0
        %601 = vmatpush1.msra.mxu0 0.0
        %602 = vmatprep.subr.mxu0 0.0
        %603 = vmatpush1.msra.mxu0 0.0
        %604 = vmatprep.subr.mxu0 0.0
        %605 = vmatpush1.msra.mxu0 0.0
        %606 = vmatprep.subr.mxu0 0.0
        %607 = vmatpush1.msra.mxu0 0.0
        %608 = vmatprep.subr.mxu0 0.0
        %609 = vmatpush1.msra.mxu0 0.0
        %610 = vmatprep.subr.mxu0 0.0
        %611 = vmatpush1.msra.mxu0 0.0
        %612 = vmatprep.subr.mxu0 0.0
        %613 = vmatpush1.msra.mxu0 0.0
        %614 = vmatprep.subr.mxu0 0.0
        %615 = vmatpush1.msra.mxu0 0.0
        %616 = vmatprep.mubr.f32.mxu0 0.0
        %617 = vmatmul.mubr.f32.gmra.mrb[0].mxu0 %v541
        %v618 = vpop.f32.mrb[0].mxu0
        %v619 = vadd.f32 %v522, %v618
        %v620 = vpop.f32.mrb[0].mxu0
        %621 = vmatprep.mubr.f32.mxu0 0.0
        %622 = vmatmul.mubr.f32.gmra.mrb[0].mxu0 %v544
        %v623 = vpop.f32.mrb[0].mxu0
        %v624 = vadd.f32 %v527, %v623
        %v625 = vpop.f32.mrb[0].mxu0
        %626 = vmatprep.mubr.f32.mxu0 0.0
        %627 = vmatmul.mubr.f32.gmra.mrb[0].mxu0 %v547
        %v628 = vpop.f32.mrb[0].mxu0
        %v629 = vadd.f32 %v532, %v628
        %v630 = vpop.f32.mrb[0].mxu0
        %631 = vmatprep.mubr.f32.mxu0 0.0
        %632 = vmatmul.mubr.f32.gmra.mrb[0].mxu0 %v550
        %v633 = vpop.f32.mrb[0].mxu0
        %v634 = vadd.f32 %v537, %v633
        %v635 = vpop.f32.mrb[0].mxu0
        %636 = vdwg.mxu0
        %v637 = vmax.f32 %v619, 0.0
        %v638 = vmax.f32 %v624, 0.0
        %v639 = vmax.f32 %v629, 0.0
        %v640 = vmax.f32 %v634, 0.0
        %v641 = vld [vmem:[%s5] sm:$0xff]
        %v642 = vld [vmem:[%s5 + $0x8] sm:$0xff]
        %v643 = vld [vmem:[%s5 + $0x10] sm:$0xff]
        %v644 = vld [vmem:[%s5 + $0x18] sm:$0xff]
        %646 = vset.pattern.permute.xlu0 0
        %647 = vperm.xlu0 %646, %v641
        %v648 = vpop.permute.xlu0 %647
        %651 = vset.pattern.permute.xlu0 0
        %652 = vperm.xlu0 %651, %v642
        %v653 = vpop.permute.xlu0 %652
        %656 = vset.pattern.permute.xlu0 0
        %657 = vperm.xlu0 %656, %v643
        %v658 = vpop.permute.xlu0 %657
        %661 = vset.pattern.permute.xlu0 0
        %662 = vperm.xlu0 %661, %v644
        %v663 = vpop.permute.xlu0 %662
        %v665 = vmul.f32 %v637, %v648
        %v666 = vmul.f32 %v638, %v653
        %v667 = vmul.f32 %v639, %v658
        %v668 = vmul.f32 %v640, %v663
        %v669 = vadd.f32 %v665, %v666
        %v670 = vadd.f32 %v669, %v667
        %v671 = vadd.f32 %v670, %v668
        %v672 = vrot.slane %v671, 4
        %v673 = vadd.f32 %v671, %v672
        %v674 = vrot.slane %v673, 2
        %v675 = vadd.f32 %v673, %v674
        %v676 = vrot.slane %v675, 1
        %v677 = vadd.f32 %v675, %v676
        %s678 = sld [smem:[#allocation2]]
        %v679 = vstv %s678
        %v680 = vadd.f32 %v677, %v679
        %v681 = vmul.f32 %v680, 0.5
        %v682 = vtanh.pop %v681
        %v683 = vadd.f32 %v682, 1.0
        %v684 = vmul.f32 %v683, 0.5
        %685 = vst [vmem:[%s314] sm:$0x1] %v684
        %s686 = sand.u32 %s182, 1
        %s687 = scalar_lea.sflag [#allocation5], %s686
        %s688 = sand.u32 %s182, 1
        %s689 = scalar_lea.vmem [#allocation4], %s688
        // Predicated region
        $region87: #{tpu_custom_call.1} parent=81 // pred_check
          %p690 = pneg %p192
        $region88: #{tpu_custom_call.1} parent=81 // pred_check_branch
          %692 = sbr.rel (%p690) target = $region90
        $region89: #{tpu_custom_call.1} parent=81 // pred_region
          %s694 = ssub.s32 16, 16
          %695 = vsyncadd %s687, %s694
          %s696 = smul.addr %s22, 16
          %s697 = scalar_lea.hbm %s7, %s696
          %s699 = sshll.u32 %s689, 4
          %s700 = int_to_ptr.vmem [resolvable:$true] %s699
          %702 = dma.vmem_to_hbm [thread:$0]  %s700, 16, %s697, %s687
        $region90: #{tpu_custom_call.1} parent=81 // pred_fallthru
          _
      $region82: #{tpu_custom_call.1} parent=5 // pred_fallthru
        _
      %p703 = scmp.le.s32.totalorder 2, %s17
      // Predicated region
      $region91: #{tpu_custom_call.1} parent=5 // pred_check
        %p704 = pneg %p703
      $region92: #{tpu_custom_call.1} parent=5 // pred_check_branch
        %706 = sbr.rel (%p704) target = $region94
      $region93: #{tpu_custom_call.1} parent=5 // pred_region
        %s707 = ssub.s32 %s17, 2
        // Predicated region
        $region95: #{tpu_custom_call.1} parent=93 // pred_check
          %p708 = pneg %p198
        $region96: #{tpu_custom_call.1} parent=93 // pred_check_branch
          %710 = sbr.rel (%p708) target = $region98
        $region97: #{tpu_custom_call.1} parent=93 // pred_region
          %s711 = sand.u32 %s183, 1
          %s712 = scalar_lea.sflag [#allocation5], %s711
          %s713 = sand.u32 %s183, 1
          %s714 = scalar_lea.vmem [#allocation4], %s713
          %715 = dma.done %s712, 16
        $region98: #{tpu_custom_call.1} parent=93 // pred_fallthru
          _
      $region94: #{tpu_custom_call.1} parent=5 // pred_fallthru
        _
    $region6: #{tpu_custom_call.1} parent=1 // loop_footer
      %s21 = sadd.s32 1, %s17
    $region7: #{tpu_custom_call.1} parent=1 // loop_footer_branch
      %16 = sbr.rel target = $region3
    $region8: #{tpu_custom_call.1} parent=1 // loop_exit
      _
    %716 = vsyncpa [#allocation5], 1
    %s717 = scalar_lea.sflag [#allocation5], 1
    %718 = vsyncpa %s717, 1

</llo_original>
